<compile_context>
chip_gen: v5e
topology: v5e:2x2
jax: 0.10.0
libtpu: 0.0.40
codegen_flags: <defaults>
</compile_context>

<pallas_src>
import math

import jax
import jax.numpy as jnp
from jax.experimental import pallas as pl
from jax.experimental.pallas import tpu as pltpu

# ~3 MiB per block: with in+out double buffering that is <= 12 MiB VMEM,
# safe on every generation (v5e 16 MiB scoped, v6e 32 MiB, v7x 64 MiB phys).
_BLOCK_BYTES = 3 * 1024 * 1024


def _copy_kernel(x_ref, o_ref):
    # Lane-dense identity copy: unmasked vld/vst, no in-kernel reshape.
    o_ref[...] = x_ref[...]


def _sublane_multiple(itemsize: int) -> int:
    # Native packed-row multiples: f32 -> 8, bf16/f16 -> 16, int8/fp8 -> 32.
    return {4: 8, 2: 16, 1: 32}.get(itemsize, 8)


def _pick_tiles(batch: int, feat: int, itemsize: int) -> tuple[int, int]:
    """Byte-budgeted block shape obeying the (8,128)-or-full-dim constraint."""
    sub = _sublane_multiple(itemsize)
    row_bytes = feat * itemsize

    # Case 1: a full feature row fits the budget -> full-feat rows
    # (one contiguous DMA per block), tile only the batch axis.
    if row_bytes <= _BLOCK_BYTES:
        tile_f = feat
        max_rows = max(_BLOCK_BYTES // max(row_bytes, 1), 1)
        if batch <= max_rows:
            tile_b = batch                      # full dim (allowed)
        else:
            tile_b = max((max_rows // sub) * sub, sub)
            tile_b = min(tile_b, batch)
        return tile_b, tile_f

    # Case 2: rows wider than the budget -> minimal sublane-aligned batch
    # tile, split the feature axis into 128-lane multiples.
    tile_b = batch if batch < sub else sub
    cap_f = max(_BLOCK_BYTES // (tile_b * itemsize), 128)
    cap_f = (cap_f // 128) * 128
    if feat <= cap_f:
        return tile_b, feat
    # Prefer a multiple of 128 that divides feat evenly (no masked tail).
    tile_f = None
    for cand in range(cap_f, 127, -128):
        if feat % cand == 0:
            tile_f = cand
            break
    if tile_f is None:
        tile_f = cap_f
    return tile_b, tile_f


def _fallen_pallas(x2: jax.Array) -> jax.Array:
    """Kernelized identity copy of the already-flattened (batch, feat) slab."""
    batch, feat = x2.shape
    itemsize = x2.dtype.itemsize
    tile_b, tile_f = _pick_tiles(batch, feat, itemsize)
    grid = (pl.cdiv(batch, tile_b), pl.cdiv(feat, tile_f))

    return pl.pallas_call(
        _copy_kernel,
        out_shape=jax.ShapeDtypeStruct((batch, feat), x2.dtype),
        grid=grid,
        in_specs=[pl.BlockSpec((tile_b, tile_f), lambda i, j: (i, j))],
        out_specs=pl.BlockSpec((tile_b, tile_f), lambda i, j: (i, j)),
        compiler_params=pltpu.CompilerParams(
            dimension_semantics=("parallel", "parallel")),
        cost_estimate=pl.CostEstimate(
            flops=0,
            transcendentals=0,
            bytes_accessed=2 * batch * feat * itemsize),
    )(x2)


def fallen(x: jax.Array, use_kernel: bool = False) -> jax.Array:
    """Pallas/JAX equivalent of Fallen.forward.

    Default path is a metadata-only reshape (no HBM traffic, no kernel).
    `use_kernel=True` routes through the Pallas identity-copy kernel,
    intended only as a fusion/demo site.
    """
    if x.ndim <= 1:
        # Module returns X unchanged for 0-D / 1-D inputs.
        return x

    batch = x.shape[0]
    feat = math.prod(x.shape[1:])

    # Row-major collapse of trailing axes — metadata-only on default layout.
    x2 = jnp.reshape(x, (batch, feat))
    if not use_kernel:
        return x2
    return _fallen_pallas(x2)


if __name__ == "__main__":
    key = jax.random.PRNGKey(0)

    # NCHW input consistent with a CNN feature map: (N=2, C=4, H=16, W=16).
    x = jax.random.normal(key, (2, 4, 16, 16), dtype=jnp.float32)
    ref = x.reshape(x.shape[0], -1)

    # Fast (default) path: pure metadata reshape.
    y_fast = fallen(x)
    jax.block_until_ready(y_fast)
    assert y_fast.shape == (2, 4 * 16 * 16), y_fast.shape
    assert jnp.array_equal(y_fast, ref), "fast-path mismatch vs reference"

    # Kernelized path (fusion/demo site) — exercises the Pallas kernel on TPU.
    y_kernel = fallen(x, use_kernel=True)
    jax.block_until_ready(y_kernel)
    assert y_kernel.shape == ref.shape and y_kernel.dtype == x.dtype
    assert jnp.array_equal(y_kernel, ref), "kernel mismatch vs reference"

    # bf16 input exercising the dtype-aware sublane tiling (feat not a
    # multiple of 128 -> full-feat single-block rows, no masked stores).
    xb = jax.random.normal(jax.random.PRNGKey(1), (16, 3, 5, 7),
                           dtype=jnp.bfloat16)
    yb = fallen(xb, use_kernel=True)
    jax.block_until_ready(yb)
    assert jnp.array_equal(yb, xb.reshape(16, -1)), "bf16 kernel mismatch"

    # 1-D passthrough path.
    v = jnp.arange(7, dtype=jnp.float32)
    assert jnp.array_equal(fallen(v), v)

    print("KERNEL_OK")
</pallas_src>

<mosaic_0001>
module attributes {stable_mosaic.version = 11 : i64} {
  func.func @_copy_kernel(%arg0: i32, %arg1: i32, %arg2: memref<2x1024xf32, #tpu.memory_space<vmem>>, %arg3: memref<2x1024xf32, #tpu.memory_space<vmem>>) attributes {dimension_semantics = [#tpu.dimension_semantics<parallel>, #tpu.dimension_semantics<parallel>], iteration_bounds = array<i64: 1, 1>, scalar_prefetch = 0 : i64, scratch_operands = 0 : i64, tpu.core_type = #tpu.core_type<tc>, window_params = [{transform_indices = @transform_0, window_bounds = array<i64: 2, 1024>}, {transform_indices = @transform_1, window_bounds = array<i64: 2, 1024>}]} {
    %c0 = arith.constant 0 : index
    %c0_0 = arith.constant 0 : index
    %0 = vector.load %arg2[%c0, %c0_0] : memref<2x1024xf32, #tpu.memory_space<vmem>>, vector<2x1024xf32>
    %c0_1 = arith.constant 0 : index
    %c0_2 = arith.constant 0 : index
    %1 = vector.load %arg3[%c0_1, %c0_2] : memref<2x1024xf32, #tpu.memory_space<vmem>>, vector<2x1024xf32>
    tpu.vector_store %arg3[%c0_1, %c0_2], %0 {strides = array<i32>} : memref<2x1024xf32, #tpu.memory_space<vmem>>, vector<2x1024xf32>,
    return
  }
  func.func @transform_0(%arg0: i32, %arg1: i32) -> (i32, i32) {
    %c0_i32 = arith.constant 0 : i32
    return %arg0, %arg1 : i32, i32
  }
  func.func @transform_1(%arg0: i32, %arg1: i32) -> (i32, i32) {
    %c0_i32 = arith.constant 0 : i32
    return %arg0, %arg1 : i32, i32
  }
}

</mosaic_0001>

<llo_original>
// kernel: tpu_custom_call.1
$region0: #{tpu_custom_call.1}
  #allocation0 [shape = 'u32[]', space=smem, size = 0x4, offset = 0x4, fixed_abs, tag = 'smem constant byte address 0x4 - core index']
  #allocation1 [shape = 'u32[72,128]{1,0:T(1,128)}', space=vmem, size = 0x9000, scoped, tag = 'internal scratch']
  %s0 = inlined_call_operand.hbm [shape: f32[2,1024], index: 0, kind: input, shape index: {}]
  %s1 = inlined_call_operand.hbm [shape: f32[2,1024], index: 1, kind: output, shape index: {}]
  %s2 = sld [smem:[#allocation0]]
  $region18: #{tpu_custom_call.1} parent=0
    _
  %s4 = ssub.s32 1, %s2
  %s5 = scalar_select 0, %s4, %s2
  $region1: #{tpu_custom_call.1} parent=0
    #allocation2 [shape = 'u8[8192]{0}', space=vmem, size = 0x2000, scoped, tag = 'input window, operand 0, single buffered']
    #allocation3 [shape = 's32[1]{0}', space=sflag, size = 0x4, scoped, tag = 'scoped memory for tpu_custom_call.1']
    #allocation4 [shape = 's32[1]{0}', space=sflag, size = 0x4, scoped, tag = 'scoped memory for tpu_custom_call.1']
    #allocation5 [shape = 'u8[8192]{0}', space=vmem, size = 0x2000, scoped, tag = 'output window, operand 0, single buffered']
    %6 = vsyncpa [#allocation3], 0
    %7 = vsyncpa [#allocation4], 0
    // Predicated region
    $region2: #{tpu_custom_call.1} parent=1 // pred_check
      _
    $region3: #{tpu_custom_call.1} parent=1 // pred_check_branch
      %9 = sbr.rel (0) target = $region5
    $region4: #{tpu_custom_call.1} parent=1 // pred_region
      %11 = vsyncadd [#allocation3], 0
      %s13 = sshll.u32 %s0, 4
      %s14 = int_to_ptr.hbm [resolvable:$true] %s13
      %s15 = sshll.u32 [#allocation2], 4
      %s16 = int_to_ptr.vmem [resolvable:$true] %s15
      %18 = dma.hbm_to_vmem [thread:$0]  %s14, 256, %s16, [#allocation3]
    $region5: #{tpu_custom_call.1} parent=1 // pred_fallthru
      _
    // Predicated region
    $region6: #{tpu_custom_call.1} parent=1 // pred_check
      _
    $region7: #{tpu_custom_call.1} parent=1 // pred_check_branch
      %20 = sbr.rel (0) target = $region9
    $region8: #{tpu_custom_call.1} parent=1 // pred_region
      %22 = dma.done [#allocation3], 256
    $region9: #{tpu_custom_call.1} parent=1 // pred_fallthru
      _
    %v23 = vld [vmem:[#allocation2] sm:$0xff]
    %v24 = vld [vmem:[#allocation2 + $0x8] sm:$0xff]
    %25 = vst [vmem:[#allocation5] sm:$0xff] %v23
    %26 = vst [vmem:[#allocation5 + $0x8] sm:$0xff] %v24
    // Predicated region
    $region10: #{tpu_custom_call.1} parent=1 // pred_check
      _
    $region11: #{tpu_custom_call.1} parent=1 // pred_check_branch
      %28 = sbr.rel (0) target = $region13
    $region12: #{tpu_custom_call.1} parent=1 // pred_region
      %30 = vsyncadd [#allocation4], 0
      %s32 = sshll.u32 [#allocation5], 4
      %s33 = int_to_ptr.vmem [resolvable:$true] %s32
      %s34 = sshll.u32 %s1, 4
      %s35 = int_to_ptr.hbm [resolvable:$true] %s34
      %37 = dma.vmem_to_hbm [thread:$0]  %s33, 256, %s35, [#allocation4]
    $region13: #{tpu_custom_call.1} parent=1 // pred_fallthru
      _
    // Predicated region
    $region14: #{tpu_custom_call.1} parent=1 // pred_check
      _
    $region15: #{tpu_custom_call.1} parent=1 // pred_check_branch
      %39 = sbr.rel (0) target = $region17
    $region16: #{tpu_custom_call.1} parent=1 // pred_region
      %41 = dma.done [#allocation4], 256
    $region17: #{tpu_custom_call.1} parent=1 // pred_fallthru
      _
    %42 = vsyncpa [#allocation3], 1
    %43 = vsyncpa [#allocation4], 1

</llo_original>
